<compile_context>
chip_gen: v7x
topology: tpu7x:2x2x1
jax: 0.10.0
libtpu: 0.0.40
codegen_flags: <defaults>
</compile_context>

<pallas_src>
import jax
import jax.numpy as jnp
from jax.experimental import pallas as pl
from jax.experimental.pallas import tpu as pltpu

_VMEM_STEP_BUDGET_BYTES = 12 * 1024 * 1024   # target per-step (double-buffered) footprint
_VMEM_LIMIT_BYTES = 32 * 1024 * 1024         # safe on v5e/v6e/v7x


def _concat_lanes_kernel(*refs):
    """refs = (x_ref_0, ..., x_ref_{k-1}, o_ref).

    Every block is (Nb, L_i) for inputs and (Nb, L_total) for the output; each
    input is written to its static lane offset of the output tile.
    """
    *x_refs, o_ref = refs
    off = 0
    for x_ref in x_refs:
        l = x_ref.shape[1]                 # static flattened width of this input
        o_ref[:, off:off + l] = x_ref[...]
        off += l


def _pick_batch_rows(n, row_bytes):
    """Pick rows-per-block so 2x(double-buffer) * (inputs + output) fits the budget."""
    nb = max(1, _VMEM_STEP_BUDGET_BYTES // max(1, 4 * row_bytes))
    if nb >= n:
        return n                            # full batch in one block (full-extent dim: OK)
    # A non-full second-to-last block dim must be a multiple of 8 (sublane tiling).
    nb = max(8, (nb // 8) * 8)
    # TODO(synk): for extremely large per-row slabs (row_bytes >> budget) add a
    # lane-chunk grid axis instead of overshooting the VMEM budget here.
    return min(nb, n)


def concat_channels(xs):
    """Concatenate a list/tuple of NCHW arrays along the channel axis (dim=1)."""
    assert len(xs) >= 1
    n, _, h, w = xs[0].shape
    dtype = xs[0].dtype
    for x in xs:
        assert x.ndim == 4 and x.shape[0] == n and x.shape[2] == h and x.shape[3] == w
        assert x.dtype == dtype

    hw = h * w
    lanes = [x.shape[1] * hw for x in xs]   # flattened per-input widths
    l_total = sum(lanes)
    c_total = l_total // hw

    # Lane-dense flat layout: one contiguous slab per batch row.
    xs_flat = [x.reshape(n, l) for x, l in zip(xs, lanes)]

    itemsize = jnp.dtype(dtype).itemsize
    row_bytes = l_total * itemsize          # output row; input rows sum to the same
    nb = _pick_batch_rows(n, row_bytes)
    grid = (pl.cdiv(n, nb),)

    in_specs = [pl.BlockSpec((nb, l), lambda i: (i, 0)) for l in lanes]
    out_spec = pl.BlockSpec((nb, l_total), lambda i: (i, 0))

    out_flat = pl.pallas_call(
        _concat_lanes_kernel,
        out_shape=jax.ShapeDtypeStruct((n, l_total), dtype),
        grid_spec=pltpu.PrefetchScalarGridSpec(
            num_scalar_prefetch=0,
            grid=grid,
            in_specs=in_specs,
            out_specs=out_spec,
        ),
        compiler_params=pltpu.CompilerParams(
            dimension_semantics=("parallel",),   # batch blocks are independent (v7x 2-TC split)
            vmem_limit_bytes=_VMEM_LIMIT_BYTES,  # v5e default scoped VMEM is only 16 MiB
        ),
    )(*xs_flat)

    return out_flat.reshape(n, c_total, h, w)


class Concat:
    """JAX/Pallas equivalent of YOLOv5 Concat (only dimension=1 is kernelized)."""

    def __init__(self, dimension=1):
        self.d = dimension

    def __call__(self, x):
        if self.d == 1 and all(xi.ndim == 4 for xi in x):
            return concat_channels(x)
        # TODO(synk): non-channel concat dims fall back to plain JAX.
        return jnp.concatenate(x, axis=self.d)


if __name__ == "__main__":
    key = jax.random.PRNGKey(0)
    k1, k2, k3 = jax.random.split(key, 3)

    # Small NCHW inputs with differing channel counts (typical YOLO skip concat).
    x1 = jax.random.normal(k1, (2, 4, 16, 16), dtype=jnp.float32)
    x2 = jax.random.normal(k2, (2, 8, 16, 16), dtype=jnp.float32)
    x3 = jax.random.normal(k3, (2, 4, 16, 16), dtype=jnp.float32)

    module = Concat(dimension=1)
    out = jax.block_until_ready(module([x1, x2, x3]))

    ref = jnp.concatenate([x1, x2, x3], axis=1)
    assert out.shape == ref.shape, (out.shape, ref.shape)
    assert jnp.array_equal(out, ref), "Pallas concat mismatch vs jnp.concatenate (f32)"

    # Narrow-dtype check (bf16): flattened lane layout keeps packing dense.
    y1 = x1.astype(jnp.bfloat16)
    y2 = x2.astype(jnp.bfloat16)
    y3 = x3.astype(jnp.bfloat16)
    out_bf16 = jax.block_until_ready(module([y1, y2, y3]))
    ref_bf16 = jnp.concatenate([y1, y2, y3], axis=1)
    assert jnp.array_equal(out_bf16, ref_bf16), "Pallas concat mismatch vs jnp.concatenate (bf16)"

    print("KERNEL_OK")
</pallas_src>

<mosaic_0001>
module attributes {stable_mosaic.version = 11 : i64} {
  func.func @_concat_lanes_kernel(%arg0: i32, %arg1: memref<2x1024xf32, #tpu.memory_space<vmem>>, %arg2: memref<2x2048xf32, #tpu.memory_space<vmem>>, %arg3: memref<2x1024xf32, #tpu.memory_space<vmem>>, %arg4: memref<2x4096xf32, #tpu.memory_space<vmem>>) attributes {dimension_semantics = [#tpu.dimension_semantics<parallel>], iteration_bounds = array<i64: 1>, scalar_prefetch = 0 : i64, scratch_operands = 0 : i64, tpu.core_type = #tpu.core_type<tc>, window_params = [{transform_indices = @transform_0, window_bounds = array<i64: 2, 1024>}, {transform_indices = @transform_1, window_bounds = array<i64: 2, 2048>}, {transform_indices = @transform_2, window_bounds = array<i64: 2, 1024>}, {transform_indices = @transform_3, window_bounds = array<i64: 2, 4096>}]} {
    %c0 = arith.constant 0 : index
    %c0_0 = arith.constant 0 : index
    %0 = vector.load %arg1[%c0, %c0_0] : memref<2x1024xf32, #tpu.memory_space<vmem>>, vector<2x1024xf32>
    %c0_1 = arith.constant 0 : index
    %c0_2 = arith.constant 0 : index
    %1 = vector.load %arg4[%c0_1, %c0_2] : memref<2x4096xf32, #tpu.memory_space<vmem>>, vector<2x1024xf32>
    tpu.vector_store %arg4[%c0_1, %c0_2], %0 {strides = array<i32>} : memref<2x4096xf32, #tpu.memory_space<vmem>>, vector<2x1024xf32>,
    %c0_3 = arith.constant 0 : index
    %c0_4 = arith.constant 0 : index
    %2 = vector.load %arg2[%c0_3, %c0_4] : memref<2x2048xf32, #tpu.memory_space<vmem>>, vector<2x2048xf32>
    %c0_5 = arith.constant 0 : index
    %c1024 = arith.constant 1024 : index
    %3 = vector.load %arg4[%c0_5, %c1024] : memref<2x4096xf32, #tpu.memory_space<vmem>>, vector<2x2048xf32>
    tpu.vector_store %arg4[%c0_5, %c1024], %2 {strides = array<i32>} : memref<2x4096xf32, #tpu.memory_space<vmem>>, vector<2x2048xf32>,
    %c0_6 = arith.constant 0 : index
    %c0_7 = arith.constant 0 : index
    %4 = vector.load %arg3[%c0_6, %c0_7] : memref<2x1024xf32, #tpu.memory_space<vmem>>, vector<2x1024xf32>
    %c0_8 = arith.constant 0 : index
    %c3072 = arith.constant 3072 : index
    %5 = vector.load %arg4[%c0_8, %c3072] : memref<2x4096xf32, #tpu.memory_space<vmem>>, vector<2x1024xf32>
    tpu.vector_store %arg4[%c0_8, %c3072], %4 {strides = array<i32>} : memref<2x4096xf32, #tpu.memory_space<vmem>>, vector<2x1024xf32>,
    return
  }
  func.func @transform_0(%arg0: i32) -> (i32, i32) {
    %c0_i32 = arith.constant 0 : i32
    %c0_i32_0 = arith.constant 0 : i32
    return %arg0, %c0_i32 : i32, i32
  }
  func.func @transform_1(%arg0: i32) -> (i32, i32) {
    %c0_i32 = arith.constant 0 : i32
    %c0_i32_0 = arith.constant 0 : i32
    return %arg0, %c0_i32 : i32, i32
  }
  func.func @transform_2(%arg0: i32) -> (i32, i32) {
    %c0_i32 = arith.constant 0 : i32
    %c0_i32_0 = arith.constant 0 : i32
    return %arg0, %c0_i32 : i32, i32
  }
  func.func @transform_3(%arg0: i32) -> (i32, i32) {
    %c0_i32 = arith.constant 0 : i32
    %c0_i32_0 = arith.constant 0 : i32
    return %arg0, %c0_i32 : i32, i32
  }
}

</mosaic_0001>

<llo_original>
// kernel: tpu_custom_call.1
$region0: #{tpu_custom_call.1}
  #allocation0 [shape = 'u32[]', space=smem, size = 0x4, offset = 0x4, fixed_abs, tag = 'smem constant byte address 0x4 - core index']
  #allocation1 [shape = 'u32[144,128]{1,0:T(1,128)}', space=vmem, size = 0x12000, scoped, tag = 'internal scratch']
  %s0 = inlined_call_operand.hbm [shape: f32[2,1024], index: 0, kind: input, shape index: {}]
  %s1 = inlined_call_operand.hbm [shape: f32[2,2048], index: 1, kind: input, shape index: {}]
  %s2 = inlined_call_operand.hbm [shape: f32[2,1024], index: 2, kind: input, shape index: {}]
  %s3 = inlined_call_operand.hbm [shape: f32[2,4096], index: 3, kind: output, shape index: {}]
  %s4 = sld [smem:[#allocation0]]
  $region34: #{tpu_custom_call.1} parent=0
    _
  %s6 = ssub.s32 1, %s4
  %s7 = scalar_select 0, %s6, %s4
  $region1: #{tpu_custom_call.1} parent=0
    #allocation2 [shape = 'u8[8192]{0}', space=vmem, size = 0x2000, scoped, tag = 'input window, operand 0, single buffered']
    #allocation3 [shape = 's32[1]{0}', space=sflag, size = 0x4, scoped, tag = 'scoped memory for tpu_custom_call.1']
    #allocation4 [shape = 's32[1]{0}', space=sflag, size = 0x4, scoped, tag = 'scoped memory for tpu_custom_call.1']
    #allocation5 [shape = 'u8[16384]{0}', space=vmem, size = 0x4000, scoped, tag = 'input window, operand 1, single buffered']
    #allocation6 [shape = 's32[1]{0}', space=sflag, size = 0x4, scoped, tag = 'scoped memory for tpu_custom_call.1']
    #allocation7 [shape = 'u8[8192]{0}', space=vmem, size = 0x2000, scoped, tag = 'input window, operand 2, single buffered']
    #allocation8 [shape = 'u8[32768]{0}', space=vmem, size = 0x8000, scoped, tag = 'output window, operand 0, single buffered']
    %8 = vsyncpa [#allocation3], 0
    %9 = vsyncpa [#allocation6], 0
    %10 = vsyncpa [#allocation4], 0
    // Predicated region
    $region2: #{tpu_custom_call.1} parent=1 // pred_check
      _
    $region3: #{tpu_custom_call.1} parent=1 // pred_check_branch
      %12 = sbr.rel (0) target = $region5
    $region4: #{tpu_custom_call.1} parent=1 // pred_region
      %s14 = ssub.s32 256, 256
      %15 = vsyncadd [#allocation3], %s14
      %s17 = sshll.u32 [#allocation2], 4
      %s18 = int_to_ptr.vmem [resolvable:$true] %s17
      %20 = dma.hbm_to_vmem [thread:$0]  %s0, 256, %s18, [#allocation3]
    $region5: #{tpu_custom_call.1} parent=1 // pred_fallthru
      _
    // Predicated region
    $region6: #{tpu_custom_call.1} parent=1 // pred_check
      _
    $region7: #{tpu_custom_call.1} parent=1 // pred_check_branch
      %22 = sbr.rel (0) target = $region9
    $region8: #{tpu_custom_call.1} parent=1 // pred_region
      %s24 = ssub.s32 512, 512
      %25 = vsyncadd [#allocation6], %s24
      %s27 = sshll.u32 [#allocation5], 4
      %s28 = int_to_ptr.vmem [resolvable:$true] %s27
      %30 = dma.hbm_to_vmem [thread:$0]  %s1, 512, %s28, [#allocation6]
    $region9: #{tpu_custom_call.1} parent=1 // pred_fallthru
      _
    // Predicated region
    $region10: #{tpu_custom_call.1} parent=1 // pred_check
      _
    $region11: #{tpu_custom_call.1} parent=1 // pred_check_branch
      %32 = sbr.rel (0) target = $region13
    $region12: #{tpu_custom_call.1} parent=1 // pred_region
      %s34 = ssub.s32 256, 256
      %35 = vsyncadd [#allocation6], %s34
      %s37 = sshll.u32 [#allocation7], 4
      %s38 = int_to_ptr.vmem [resolvable:$true] %s37
      %40 = dma.hbm_to_vmem [thread:$0]  %s2, 256, %s38, [#allocation6]
    $region13: #{tpu_custom_call.1} parent=1 // pred_fallthru
      _
    // Predicated region
    $region14: #{tpu_custom_call.1} parent=1 // pred_check
      _
    $region15: #{tpu_custom_call.1} parent=1 // pred_check_branch
      %42 = sbr.rel (0) target = $region17
    $region16: #{tpu_custom_call.1} parent=1 // pred_region
      %43 = dma.done [#allocation3], 256
    $region17: #{tpu_custom_call.1} parent=1 // pred_fallthru
      _
    // Predicated region
    $region18: #{tpu_custom_call.1} parent=1 // pred_check
      _
    $region19: #{tpu_custom_call.1} parent=1 // pred_check_branch
      %45 = sbr.rel (0) target = $region21
    $region20: #{tpu_custom_call.1} parent=1 // pred_region
      %46 = dma.done [#allocation6], 512
    $region21: #{tpu_custom_call.1} parent=1 // pred_fallthru
      _
    // Predicated region
    $region22: #{tpu_custom_call.1} parent=1 // pred_check
      _
    $region23: #{tpu_custom_call.1} parent=1 // pred_check_branch
      %48 = sbr.rel (0) target = $region25
    $region24: #{tpu_custom_call.1} parent=1 // pred_region
      %49 = dma.done [#allocation6], 256
    $region25: #{tpu_custom_call.1} parent=1 // pred_fallthru
      _
    %v50 = vld [vmem:[#allocation2] sm:$0xff]
    %v51 = vld [vmem:[#allocation2 + $0x8] sm:$0xff]
    %52 = vst [vmem:[#allocation8] sm:$0xff] %v50
    %53 = vst [vmem:[#allocation8 + $0x8] sm:$0xff] %v51
    %v54 = vld [vmem:[#allocation5] sm:$0xff]
    %v55 = vld [vmem:[#allocation5 + $0x8] sm:$0xff]
    %v56 = vld [vmem:[#allocation5 + $0x10] sm:$0xff]
    %v57 = vld [vmem:[#allocation5 + $0x18] sm:$0xff]
    %58 = vst [vmem:[#allocation8 + $0x10] sm:$0xff] %v54
    %59 = vst [vmem:[#allocation8 + $0x18] sm:$0xff] %v55
    %60 = vst [vmem:[#allocation8 + $0x20] sm:$0xff] %v56
    %61 = vst [vmem:[#allocation8 + $0x28] sm:$0xff] %v57
    %v62 = vld [vmem:[#allocation7] sm:$0xff]
    %v63 = vld [vmem:[#allocation7 + $0x8] sm:$0xff]
    %64 = vst [vmem:[#allocation8 + $0x30] sm:$0xff] %v62
    %65 = vst [vmem:[#allocation8 + $0x38] sm:$0xff] %v63
    // Predicated region
    $region26: #{tpu_custom_call.1} parent=1 // pred_check
      _
    $region27: #{tpu_custom_call.1} parent=1 // pred_check_branch
      %67 = sbr.rel (0) target = $region29
    $region28: #{tpu_custom_call.1} parent=1 // pred_region
      %s69 = ssub.s32 1024, 1024
      %70 = vsyncadd [#allocation4], %s69
      %s72 = sshll.u32 [#allocation8], 4
      %s73 = int_to_ptr.vmem [resolvable:$true] %s72
      %75 = dma.vmem_to_hbm [thread:$0]  %s73, 1024, %s3, [#allocation4]
    $region29: #{tpu_custom_call.1} parent=1 // pred_fallthru
      _
    // Predicated region
    $region30: #{tpu_custom_call.1} parent=1 // pred_check
      _
    $region31: #{tpu_custom_call.1} parent=1 // pred_check_branch
      %77 = sbr.rel (0) target = $region33
    $region32: #{tpu_custom_call.1} parent=1 // pred_region
      %78 = dma.done [#allocation4], 1024
    $region33: #{tpu_custom_call.1} parent=1 // pred_fallthru
      _
    %79 = vsyncpa [#allocation3], 1
    %80 = vsyncpa [#allocation6], 1
    %81 = vsyncpa [#allocation4], 1

</llo_original>
